<compile_context>
chip_gen: v7x
topology: tpu7x:2x2x1
jax: 0.10.0
libtpu: 0.0.40
codegen_flags: <defaults>
</compile_context>

<pallas_src>
import functools

import jax
import jax.numpy as jnp
from jax import lax
from jax.experimental import pallas as pl
from jax.experimental.pallas import tpu as pltpu

EPS = 1e-5


def _policy_head_kernel(x_ref, wc_ref, g_ref, b_ref, wf_ref, bf_ref, out_ref,
                        *, s_valid):
    # x_ref  : (Cin, N*S_PAD)       bf16  channels-major activations, spatial
    #                                      zero-padded to S_PAD on lanes
    # wc_ref : (CO, Cin)            bf16  conv 1x1 weight
    # g_ref  : (CO, 1)              f32   BN gamma
    # b_ref  : (CO, 1)              f32   BN beta
    # wf_ref : (CO*S_PAD, OUT_PAD)  bf16  fc weight (zero rows at padded s,
    #                                      zero cols at padded outputs)
    # bf_ref : (1, OUT_PAD)         f32   fc bias (zero-padded)
    # out_ref: (N, OUT_PAD)         f32
    CO = wc_ref.shape[0]
    M = x_ref.shape[1]
    N = out_ref.shape[0]
    S_pad = M // N

    # ---- 1x1 conv: one MXU matmul (K = Cin = 128), lane-dense (CO, M) -------
    # (Conv bias intentionally omitted: cancelled by training-mode BN.)
    y = jnp.dot(wc_ref[...], x_ref[...],
                preferred_element_type=jnp.float32)             # (CO, M)

    # ---- training-mode BatchNorm2d: single-pass masked stats ---------------
    lane = lax.broadcasted_iota(jnp.int32, (1, M), 1)
    valid = (lane % S_pad) < s_valid                            # (1, M)
    yv = jnp.where(valid, y, 0.0)
    inv_cnt = jnp.float32(1.0 / (N * s_valid))                  # divide by N*H*W
    s1 = jnp.sum(yv, axis=1, keepdims=True)                     # (CO, 1)
    s2 = jnp.sum(yv * yv, axis=1, keepdims=True)                # (CO, 1)
    mean = s1 * inv_cnt
    var = jnp.maximum(s2 * inv_cnt - mean * mean, 0.0)          # biased var
    scale = g_ref[...] * lax.rsqrt(var + EPS)
    shift = b_ref[...] - mean * scale
    # Fused BN + ReLU (pad lanes may become nonzero here; the zero rows of
    # wf_ref make them irrelevant for the fc).
    y = jnp.maximum(y * scale + shift, 0.0)                     # (CO, M) f32

    # ---- pack fc LHS: (N, CO*S_PAD), single K = CO*S_PAD matmul -------------
    # With S padded to 128, every slice below is 128-lane aligned: a handful of
    # free vreg views + aligned concatenates (no XLU rotates, no misaligned
    # copies).  One bf16 downcast of the packed operand.
    # TODO(synk): for the tiled large-batch version, replace this unrolled
    # packing with a (CO, N_blk, S_PAD) retile / grid-level layout, tile the
    # grid over (N_blocks, OUT_blocks) with a "parallel" axis for v7x's 2
    # TensorCores (BN stats as a separate pass or an "arbitrary" reduction
    # axis), and size N blocks for 32 MiB scoped VMEM (16 MiB on v5e).
    cols = []
    for c in range(CO):                                         # CO = 2, static
        cols.append(jnp.concatenate(
            [y[c:c + 1, n * S_pad:(n + 1) * S_pad] for n in range(N)],
            axis=0))                                            # (N, S_PAD)
    slab = jnp.concatenate(cols, axis=1).astype(jnp.bfloat16)   # (N, CO*S_PAD)

    out_ref[...] = (jnp.dot(slab, wf_ref[...],
                            preferred_element_type=jnp.float32)
                    + bf_ref[...])                              # (N, OUT_PAD)


def policy_head_forward(x, conv_w, conv_b, bn_g, bn_b, fc_w, fc_b):
    """x: (N, 128, 10, 10) NCHW; conv_w: (2,128,1,1); fc_w: (978, 200)."""
    N, Cin, H, W = x.shape
    CO = conv_w.shape[0]
    S = H * W
    OUT = fc_w.shape[0]
    S_PAD = ((S + 127) // 128) * 128          # 100 -> 128 (lane-aligned samples)
    OUT_PAD = ((OUT + 127) // 128) * 128      # 978 -> 1024 (lane-dense stores)

    # conv bias is a no-op before training-mode BatchNorm (exactly removed by
    # the mean subtraction, variance unchanged) -> not passed to the kernel.
    del conv_b

    # Stage activations channels-major, spatial zero-padded to S_PAD; cast MXU
    # operands to bf16 here (halves HBM input traffic).
    # TODO(synk): for the large-batch tiled version, fold this channels-major
    # staging into the upstream producer (or do the conv from (N_blk, Cin,
    # S_PAD) blocks in-kernel) to avoid an extra HBM round-trip on x.
    x_cm = jnp.transpose(x.reshape(N, Cin, S), (1, 0, 2))        # (Cin, N, S)
    x_cm = jnp.pad(x_cm, ((0, 0), (0, 0), (0, S_PAD - S)))
    x_cm = x_cm.reshape(Cin, N * S_PAD).astype(jnp.bfloat16)

    wc = conv_w.reshape(CO, Cin).astype(jnp.bfloat16)
    g = bn_g.reshape(CO, 1).astype(jnp.float32)
    b = bn_b.reshape(CO, 1).astype(jnp.float32)

    # fc weight (OUT, CO*S): PyTorch flatten order f = c*S + s maps to row
    # c*S_PAD + s of the packed weight; zero pad rows/cols keep the fc exact.
    wf = jnp.transpose(fc_w, (1, 0)).reshape(CO, S, OUT)
    wf = jnp.pad(wf, ((0, 0), (0, S_PAD - S), (0, OUT_PAD - OUT)))
    wf = wf.reshape(CO * S_PAD, OUT_PAD).astype(jnp.bfloat16)
    bf = jnp.pad(fc_b, (0, OUT_PAD - OUT)).reshape(1, OUT_PAD).astype(jnp.float32)

    vmem = pl.BlockSpec(memory_space=pltpu.MemorySpace.VMEM)
    out_padded = pl.pallas_call(
        functools.partial(_policy_head_kernel, s_valid=S),
        out_shape=jax.ShapeDtypeStruct((N, OUT_PAD), jnp.float32),
        in_specs=[vmem] * 6,
        out_specs=vmem,
    )(x_cm, wc, g, b, wf, bf)
    return out_padded[:, :OUT]


def policy_head_ref(x, wc, bc, g, b, wf, bf):
    """Pure-JAX f32 reference mirroring the PyTorch forward (training-mode BN)."""
    N = x.shape[0]
    y = jnp.einsum('nchw,oc->nohw', x, wc) + bc.reshape(1, -1, 1, 1)
    mean = jnp.mean(y, axis=(0, 2, 3), keepdims=True)
    var = jnp.mean((y - mean) ** 2, axis=(0, 2, 3), keepdims=True)
    y = (y - mean) / jnp.sqrt(var + EPS) * g.reshape(1, -1, 1, 1) \
        + b.reshape(1, -1, 1, 1)
    y = jnp.maximum(y, 0.0)
    feat = y.reshape(N, -1)
    return feat @ wf.T + bf


if __name__ == "__main__":
    # Shapes implied by the module: conv 128->2, spatial 10x10, fc 200->978.
    N, Cin, H, W = 2, 128, 10, 10
    CO, OUT = 2, 978

    key = jax.random.PRNGKey(0)
    kx, kcw, kcb, kg, kb, kfw, kfb = jax.random.split(key, 7)

    x = jax.random.normal(kx, (N, Cin, H, W), jnp.float32)
    conv_w = jax.random.normal(kcw, (CO, Cin, 1, 1), jnp.float32) * 0.05
    conv_b = jax.random.normal(kcb, (CO,), jnp.float32) * 0.1
    bn_g = 1.0 + 0.1 * jax.random.normal(kg, (CO,), jnp.float32)
    bn_b = 0.1 * jax.random.normal(kb, (CO,), jnp.float32)
    fc_w = jax.random.normal(kfw, (OUT, CO * H * W), jnp.float32) * 0.05
    fc_b = jax.random.normal(kfb, (OUT,), jnp.float32) * 0.1

    out = policy_head_forward(x, conv_w, conv_b, bn_g, bn_b, fc_w, fc_b)
    jax.block_until_ready(out)

    ref = policy_head_ref(x, conv_w.reshape(CO, Cin), conv_b, bn_g, bn_b,
                          fc_w, fc_b)
    assert out.shape == (N, OUT)
    max_err = jnp.max(jnp.abs(out - ref))
    # bf16 MXU operands -> ~1% relative error budget.
    assert jnp.allclose(out, ref, rtol=5e-2, atol=5e-2), f"max err {max_err}"

    print("KERNEL_OK")
</pallas_src>

<mosaic_0001>
module attributes {stable_mosaic.version = 11 : i64} {
  func.func @_policy_head_kernel(%arg0: memref<128x256xbf16, #tpu.memory_space<vmem>>, %arg1: memref<2x128xbf16, #tpu.memory_space<vmem>>, %arg2: memref<2x1xf32, #tpu.memory_space<vmem>>, %arg3: memref<2x1xf32, #tpu.memory_space<vmem>>, %arg4: memref<256x1024xbf16, #tpu.memory_space<vmem>>, %arg5: memref<1x1024xf32, #tpu.memory_space<vmem>>, %arg6: memref<2x1024xf32, #tpu.memory_space<vmem>>) attributes {dimension_semantics = [], scalar_prefetch = 0 : i64, scratch_operands = 0 : i64, tpu.core_type = #tpu.core_type<tc>} {
    %c0 = arith.constant 0 : index
    %c0_0 = arith.constant 0 : index
    %0 = vector.load %arg1[%c0, %c0_0] : memref<2x128xbf16, #tpu.memory_space<vmem>>, vector<2x128xbf16>
    %c0_1 = arith.constant 0 : index
    %c0_2 = arith.constant 0 : index
    %1 = vector.load %arg0[%c0_1, %c0_2] : memref<128x256xbf16, #tpu.memory_space<vmem>>, vector<128x256xbf16>
    %cst = arith.constant dense<0.000000e+00> : vector<2x256xf32>
    %2 = tpu.matmul %0, %1, %cst {dimension_numbers = #tpu.dot_dimension_numbers<[1], [0], [0], [1], [0, 0, 1, 1], [], []>} : vector<2x128xbf16>, vector<128x256xbf16>, vector<2x256xf32> -> vector<2x256xf32>
    %3 = tpu.iota {dimensions = array<i32: 1>} : vector<1x256xi32>
    %c128_i32 = arith.constant 128 : i32
    %c0_i32 = arith.constant 0 : i32
    %4 = arith.cmpi eq, %c128_i32, %c0_i32 : i32
    %c1_i32 = arith.constant 1 : i32
    %5 = arith.select %4, %c1_i32, %c128_i32 : i32
    %6 = vector.broadcast %5 : i32 to vector<1x256xi32>
    %7 = arith.remsi %3, %6 : vector<1x256xi32>
    %c0_i32_3 = arith.constant 0 : i32
    %8 = vector.broadcast %c0_i32_3 : i32 to vector<1x256xi32>
    %9 = arith.cmpi ne, %7, %8 : vector<1x256xi32>
    %c0_i32_4 = arith.constant 0 : i32
    %10 = vector.broadcast %c0_i32_4 : i32 to vector<1x256xi32>
    %11 = arith.cmpi slt, %7, %10 : vector<1x256xi32>
    %c0_i32_5 = arith.constant 0 : i32
    %12 = arith.cmpi slt, %5, %c0_i32_5 : i32
    %13 = vector.broadcast %12 : i1 to vector<1x256xi1>
    %14 = vector.broadcast %13 : vector<1x256xi1> to vector<1x256xi1>
    %15 = arith.xori %11, %14 : vector<1x256xi1>
    %16 = arith.andi %15, %9 : vector<1x256xi1>
    %17 = vector.broadcast %5 : i32 to vector<1x256xi32>
    %18 = arith.addi %7, %17 : vector<1x256xi32>
    %19 = arith.select %16, %18, %7 : vector<1x256xi1>, vector<1x256xi32>
    %c100_i32 = arith.constant 100 : i32
    %20 = vector.broadcast %c100_i32 : i32 to vector<1x256xi32>
    %21 = arith.cmpi slt, %19, %20 : vector<1x256xi32>
    %cst_6 = arith.constant 0.000000e+00 : f32
    %22 = vector.shape_cast %21 : vector<1x256xi1> to vector<1x256xi1>
    %23 = vector.broadcast %22 : vector<1x256xi1> to vector<2x256xi1>
    %24 = vector.broadcast %cst_6 : f32 to vector<2x256xf32>
    %25 = arith.select %23, %2, %24 : vector<2x256xi1>, vector<2x256xf32>
    %cst_7 = arith.constant dense<0.000000e+00> : vector<2xf32>
    %26 = vector.multi_reduction <add>, %25, %cst_7 [1] : vector<2x256xf32> to vector<2xf32>
    %27 = vector.shape_cast %26 : vector<2xf32> to vector<2x1xf32>
    %28 = arith.mulf %25, %25 : vector<2x256xf32>
    %cst_8 = arith.constant dense<0.000000e+00> : vector<2xf32>
    %29 = vector.multi_reduction <add>, %28, %cst_8 [1] : vector<2x256xf32> to vector<2xf32>
    %30 = vector.shape_cast %29 : vector<2xf32> to vector<2x1xf32>
    %cst_9 = arith.constant 5.000000e-03 : f32
    %31 = vector.broadcast %cst_9 : f32 to vector<2x1xf32>
    %32 = arith.mulf %27, %31 : vector<2x1xf32>
    %cst_10 = arith.constant 5.000000e-03 : f32
    %33 = vector.broadcast %cst_10 : f32 to vector<2x1xf32>
    %34 = arith.mulf %30, %33 : vector<2x1xf32>
    %35 = arith.mulf %32, %32 : vector<2x1xf32>
    %36 = arith.subf %34, %35 : vector<2x1xf32>
    %cst_11 = arith.constant 0.000000e+00 : f32
    %37 = vector.broadcast %cst_11 : f32 to vector<2x1xf32>
    %38 = arith.maximumf %36, %37 : vector<2x1xf32>
    %c0_12 = arith.constant 0 : index
    %c0_13 = arith.constant 0 : index
    %39 = vector.load %arg2[%c0_12, %c0_13] : memref<2x1xf32, #tpu.memory_space<vmem>>, vector<2x1xf32>
    %cst_14 = arith.constant 9.99999974E-6 : f32
    %40 = vector.broadcast %cst_14 : f32 to vector<2x1xf32>
    %41 = arith.addf %38, %40 : vector<2x1xf32>
    %42 = math.rsqrt %41 : vector<2x1xf32>
    %43 = arith.mulf %39, %42 : vector<2x1xf32>
    %c0_15 = arith.constant 0 : index
    %c0_16 = arith.constant 0 : index
    %44 = vector.load %arg3[%c0_15, %c0_16] : memref<2x1xf32, #tpu.memory_space<vmem>>, vector<2x1xf32>
    %45 = arith.mulf %32, %43 : vector<2x1xf32>
    %46 = arith.subf %44, %45 : vector<2x1xf32>
    %47 = vector.broadcast %43 : vector<2x1xf32> to vector<2x256xf32>
    %48 = arith.mulf %2, %47 : vector<2x256xf32>
    %49 = vector.broadcast %46 : vector<2x1xf32> to vector<2x256xf32>
    %50 = arith.addf %48, %49 : vector<2x256xf32>
    %cst_17 = arith.constant 0.000000e+00 : f32
    %51 = vector.broadcast %cst_17 : f32 to vector<2x256xf32>
    %52 = arith.maximumf %50, %51 : vector<2x256xf32>
    %53 = vector.extract_strided_slice %52 {offsets = [0, 0], sizes = [1, 128], strides = [1, 1]} : vector<2x256xf32> to vector<1x128xf32>
    %54 = vector.extract_strided_slice %52 {offsets = [0, 128], sizes = [1, 128], strides = [1, 1]} : vector<2x256xf32> to vector<1x128xf32>
    %55 = tpu.concatenate %53, %54 in 0 : vector<1x128xf32>, vector<1x128xf32> -> vector<2x128xf32>
    %56 = vector.extract_strided_slice %52 {offsets = [1, 0], sizes = [1, 128], strides = [1, 1]} : vector<2x256xf32> to vector<1x128xf32>
    %57 = vector.extract_strided_slice %52 {offsets = [1, 128], sizes = [1, 128], strides = [1, 1]} : vector<2x256xf32> to vector<1x128xf32>
    %58 = tpu.concatenate %56, %57 in 0 : vector<1x128xf32>, vector<1x128xf32> -> vector<2x128xf32>
    %59 = tpu.concatenate %55, %58 in 1 : vector<2x128xf32>, vector<2x128xf32> -> vector<2x256xf32>
    %60 = arith.truncf %59 : vector<2x256xf32> to vector<2x256xbf16>
    %c0_18 = arith.constant 0 : index
    %c0_19 = arith.constant 0 : index
    %61 = vector.load %arg4[%c0_18, %c0_19] : memref<256x1024xbf16, #tpu.memory_space<vmem>>, vector<256x1024xbf16>
    %cst_20 = arith.constant dense<0.000000e+00> : vector<2x1024xf32>
    %62 = tpu.matmul %60, %61, %cst_20 {dimension_numbers = #tpu.dot_dimension_numbers<[1], [0], [0], [1], [0, 0, 1, 1], [], []>} : vector<2x256xbf16>, vector<256x1024xbf16>, vector<2x1024xf32> -> vector<2x1024xf32>
    %c0_21 = arith.constant 0 : index
    %c0_22 = arith.constant 0 : index
    %63 = vector.load %arg5[%c0_21, %c0_22] : memref<1x1024xf32, #tpu.memory_space<vmem>>, vector<1x1024xf32>
    %64 = vector.broadcast %63 : vector<1x1024xf32> to vector<2x1024xf32>
    %65 = arith.addf %62, %64 : vector<2x1024xf32>
    %c0_23 = arith.constant 0 : index
    %c0_24 = arith.constant 0 : index
    %66 = vector.load %arg6[%c0_23, %c0_24] : memref<2x1024xf32, #tpu.memory_space<vmem>>, vector<2x1024xf32>
    tpu.vector_store %arg6[%c0_23, %c0_24], %65 {strides = array<i32>} : memref<2x1024xf32, #tpu.memory_space<vmem>>, vector<2x1024xf32>,
    return
  }
}

</mosaic_0001>

<llo_original>
// kernel: tpu_custom_call.1
$region0: #{tpu_custom_call.1}
  #allocation0 [shape = 'u32[]', space=smem, size = 0x4, offset = 0x4, fixed_abs, tag = 'smem constant byte address 0x4 - core index']
  #allocation1 [shape = 'u32[144,128]{1,0:T(1,128)}', space=vmem, size = 0x12000, scoped, tag = 'internal scratch']
  %s0 = inlined_call_operand.hbm [shape: bf16[128,256], index: 0, kind: input, shape index: {}]
  %s1 = inlined_call_operand.vmem [shape: bf16[2,128], index: 1, kind: input, shape index: {}]
  %s2 = inlined_call_operand.vmem [shape: f32[2,1], index: 2, kind: input, shape index: {}]
  %s3 = inlined_call_operand.vmem [shape: f32[2,1], index: 3, kind: input, shape index: {}]
  %s4 = inlined_call_operand.hbm [shape: bf16[256,1024], index: 4, kind: input, shape index: {}]
  %s5 = inlined_call_operand.vmem [shape: f32[1,1024], index: 5, kind: input, shape index: {}]
  %s6 = inlined_call_operand.hbm [shape: f32[2,1024], index: 6, kind: output, shape index: {}]
  %s7 = sld [smem:[#allocation0]]
  $region42: #{tpu_custom_call.1} parent=0
    _
  %s9 = ssub.s32 1, %s7
  %s10 = scalar_select 0, %s9, %s7
  $region1: #{tpu_custom_call.1} parent=0
    #allocation2 [shape = 'u8[65536]{0}', space=vmem, size = 0x10000, scoped, tag = 'input window, operand 0, single buffered']
    #allocation3 [shape = 's32[1]{0}', space=sflag, size = 0x4, scoped, tag = 'scoped memory for tpu_custom_call.1']
    #allocation4 [shape = 's32[1]{0}', space=sflag, size = 0x4, scoped, tag = 'scoped memory for tpu_custom_call.1']
    #allocation5 [shape = 'u8[524288]{0}', space=vmem, size = 0x80000, scoped, tag = 'input window, operand 4, single buffered']
    #allocation6 [shape = 's32[1]{0}', space=sflag, size = 0x4, scoped, tag = 'scoped memory for tpu_custom_call.1']
    #allocation7 [shape = 'u8[8192]{0}', space=vmem, size = 0x2000, scoped, tag = 'output window, operand 0, single buffered']
    %11 = vsyncpa [#allocation3], 0
    %12 = vsyncpa [#allocation6], 0
    %13 = vsyncpa [#allocation4], 0
    // Predicated region
    $region2: #{tpu_custom_call.1} parent=1 // pred_check
      _
    $region3: #{tpu_custom_call.1} parent=1 // pred_check_branch
      %15 = sbr.rel (0) target = $region5
    $region4: #{tpu_custom_call.1} parent=1 // pred_region
      %s17 = ssub.s32 2048, 2048
      %18 = vsyncadd [#allocation3], %s17
      %s19 = sshll.u32 [#allocation2], 4
      %s20 = int_to_ptr.vmem [resolvable:$true] %s19
      %25 = dma.hbm_to_vmem [thread:$0]  %s0, 2048, %s20, [#allocation3], 128, 128, 8
    $region5: #{tpu_custom_call.1} parent=1 // pred_fallthru
      _
    // Predicated region
    $region6: #{tpu_custom_call.1} parent=1 // pred_check
      _
    $region7: #{tpu_custom_call.1} parent=1 // pred_check_branch
      %27 = sbr.rel (0) target = $region9
    $region8: #{tpu_custom_call.1} parent=1 // pred_region
      _
    $region9: #{tpu_custom_call.1} parent=1 // pred_fallthru
      _
    // Predicated region
    $region10: #{tpu_custom_call.1} parent=1 // pred_check
      _
    $region11: #{tpu_custom_call.1} parent=1 // pred_check_branch
      %29 = sbr.rel (0) target = $region13
    $region12: #{tpu_custom_call.1} parent=1 // pred_region
      _
    $region13: #{tpu_custom_call.1} parent=1 // pred_fallthru
      _
    // Predicated region
    $region14: #{tpu_custom_call.1} parent=1 // pred_check
      _
    $region15: #{tpu_custom_call.1} parent=1 // pred_check_branch
      %31 = sbr.rel (0) target = $region17
    $region16: #{tpu_custom_call.1} parent=1 // pred_region
      _
    $region17: #{tpu_custom_call.1} parent=1 // pred_fallthru
      _
    // Predicated region
    $region18: #{tpu_custom_call.1} parent=1 // pred_check
      _
    $region19: #{tpu_custom_call.1} parent=1 // pred_check_branch
      %33 = sbr.rel (0) target = $region21
    $region20: #{tpu_custom_call.1} parent=1 // pred_region
      %s35 = ssub.s32 16384, 16384
      %36 = vsyncadd [#allocation6], %s35
      %s37 = sshll.u32 [#allocation5], 4
      %s38 = int_to_ptr.vmem [resolvable:$true] %s37
      %43 = dma.hbm_to_vmem [thread:$0]  %s4, 16384, %s38, [#allocation6], 512, 512, 32
    $region21: #{tpu_custom_call.1} parent=1 // pred_fallthru
      _
    // Predicated region
    $region22: #{tpu_custom_call.1} parent=1 // pred_check
      _
    $region23: #{tpu_custom_call.1} parent=1 // pred_check_branch
      %45 = sbr.rel (0) target = $region25
    $region24: #{tpu_custom_call.1} parent=1 // pred_region
      _
    $region25: #{tpu_custom_call.1} parent=1 // pred_fallthru
      _
    // Predicated region
    $region26: #{tpu_custom_call.1} parent=1 // pred_check
      _
    $region27: #{tpu_custom_call.1} parent=1 // pred_check_branch
      %47 = sbr.rel (0) target = $region29
    $region28: #{tpu_custom_call.1} parent=1 // pred_region
      %48 = dma.done [#allocation3], 2048
    $region29: #{tpu_custom_call.1} parent=1 // pred_fallthru
      _
    // Predicated region
    $region30: #{tpu_custom_call.1} parent=1 // pred_check
      _
    $region31: #{tpu_custom_call.1} parent=1 // pred_check_branch
      %50 = sbr.rel (0) target = $region33
    $region32: #{tpu_custom_call.1} parent=1 // pred_region
      %51 = dma.done [#allocation6], 16384
    $region33: #{tpu_custom_call.1} parent=1 // pred_fallthru
      _
    %v53 = vld [vmem:[%s1] sm:$0x1]
    %v54 = vld [vmem:[#allocation2] sm:$0xff]
    %v55 = vld [vmem:[#allocation2 + $0x8] sm:$0xff]
    %v56 = vld [vmem:[#allocation2 + $0x10] sm:$0xff]
    %v57 = vld [vmem:[#allocation2 + $0x18] sm:$0xff]
    %v58 = vld [vmem:[#allocation2 + $0x20] sm:$0xff]
    %v59 = vld [vmem:[#allocation2 + $0x28] sm:$0xff]
    %v60 = vld [vmem:[#allocation2 + $0x30] sm:$0xff]
    %v61 = vld [vmem:[#allocation2 + $0x38] sm:$0xff]
    %v62 = vld [vmem:[#allocation2 + $0x40] sm:$0xff]
    %v63 = vld [vmem:[#allocation2 + $0x48] sm:$0xff]
    %v64 = vld [vmem:[#allocation2 + $0x50] sm:$0xff]
    %v65 = vld [vmem:[#allocation2 + $0x58] sm:$0xff]
    %v66 = vld [vmem:[#allocation2 + $0x60] sm:$0xff]
    %v67 = vld [vmem:[#allocation2 + $0x68] sm:$0xff]
    %v68 = vld [vmem:[#allocation2 + $0x70] sm:$0xff]
    %v69 = vld [vmem:[#allocation2 + $0x78] sm:$0xff]
    %v86 = vunpack.c.l.b16 %v54
    %v87 = vunpack.c.h.b16 %v54
    %v88 = vunpack.c.l.b16 %v55
    %v89 = vunpack.c.h.b16 %v55
    %v90 = vunpack.c.l.b16 %v56
    %v91 = vunpack.c.h.b16 %v56
    %v92 = vunpack.c.l.b16 %v57
    %v93 = vunpack.c.h.b16 %v57
    %v94 = vunpack.c.l.b16 %v58
    %v95 = vunpack.c.h.b16 %v58
    %v96 = vunpack.c.l.b16 %v59
    %v97 = vunpack.c.h.b16 %v59
    %v98 = vunpack.c.l.b16 %v60
    %v99 = vunpack.c.h.b16 %v60
    %v100 = vunpack.c.l.b16 %v61
    %v101 = vunpack.c.h.b16 %v61
    %v102 = vunpack.c.l.b16 %v62
    %v103 = vunpack.c.h.b16 %v62
    %v104 = vunpack.c.l.b16 %v63
    %v105 = vunpack.c.h.b16 %v63
    %v106 = vunpack.c.l.b16 %v64
    %v107 = vunpack.c.h.b16 %v64
    %v108 = vunpack.c.l.b16 %v65
    %v109 = vunpack.c.h.b16 %v65
    %v110 = vunpack.c.l.b16 %v66
    %v111 = vunpack.c.h.b16 %v66
    %v112 = vunpack.c.l.b16 %v67
    %v113 = vunpack.c.h.b16 %v67
    %v114 = vunpack.c.l.b16 %v68
    %v115 = vunpack.c.h.b16 %v68
    %v116 = vunpack.c.l.b16 %v69
    %v117 = vunpack.c.h.b16 %v69
    %v118 = vpack.c.b16 %v88, %v86
    %v119 = vpack.c.b16 %v89, %v87
    %v120 = vpack.c.b16 %v92, %v90
    %v121 = vpack.c.b16 %v93, %v91
    %v122 = vpack.c.b16 %v96, %v94
    %v123 = vpack.c.b16 %v97, %v95
    %v124 = vpack.c.b16 %v100, %v98
    %v125 = vpack.c.b16 %v101, %v99
    %v126 = vpack.c.b16 %v104, %v102
    %v127 = vpack.c.b16 %v105, %v103
    %v128 = vpack.c.b16 %v108, %v106
    %v129 = vpack.c.b16 %v109, %v107
    %v130 = vpack.c.b16 %v112, %v110
    %v131 = vpack.c.b16 %v113, %v111
    %v132 = vpack.c.b16 %v116, %v114
    %v133 = vpack.c.b16 %v117, %v115
    %150 = vmatprep.subr.bf16.mxu0 %v119
    %151 = vmatpush1.bf16.msra.mxu0 %v118
    %152 = vmatprep.subr.bf16.mxu0 %v121
    %153 = vmatpush1.bf16.msra.mxu0 %v120
    %154 = vmatprep.subr.bf16.mxu0 %v123
    %155 = vmatpush1.bf16.msra.mxu0 %v122
    %156 = vmatprep.subr.bf16.mxu0 %v125
    %157 = vmatpush1.bf16.msra.mxu0 %v124
    %158 = vmatprep.subr.bf16.mxu0 %v127
    %159 = vmatpush1.bf16.msra.mxu0 %v126
    %160 = vmatprep.subr.bf16.mxu0 %v129
    %161 = vmatpush1.bf16.msra.mxu0 %v128
    %162 = vmatprep.subr.bf16.mxu0 %v131
    %163 = vmatpush1.bf16.msra.mxu0 %v130
    %164 = vmatprep.subr.bf16.mxu0 %v133
    %165 = vmatpush1.bf16.msra.mxu0 %v132
    %166 = vmatprep.subr.bf16.mxu0 0
    %167 = vmatpush1.bf16.msra.mxu0 0
    %168 = vmatprep.subr.bf16.mxu0 0
    %169 = vmatpush1.bf16.msra.mxu0 0
    %170 = vmatprep.subr.bf16.mxu0 0
    %171 = vmatpush1.bf16.msra.mxu0 0
    %172 = vmatprep.subr.bf16.mxu0 0
    %173 = vmatpush1.bf16.msra.mxu0 0
    %174 = vmatprep.subr.bf16.mxu0 0
    %175 = vmatpush1.bf16.msra.mxu0 0
    %176 = vmatprep.subr.bf16.mxu0 0
    %177 = vmatpush1.bf16.msra.mxu0 0
    %178 = vmatprep.subr.bf16.mxu0 0
    %179 = vmatpush1.bf16.msra.mxu0 0
    %180 = vmatprep.subr.bf16.mxu0 0
    %181 = vmatpush1.bf16.msra.mxu0 0
    %182 = vmatprep.mubr.bf16.mxu0 0
    %183 = vmatmul.mubr.bf16.gmra.mrb[0].mxu0 %v53
    %v184 = vpop.f32.mrb[0].mxu0
    %v185 = vadd.f32 0.0, %v184
    %v186 = vpop.f32.mrb[0].mxu0
    %v187 = vadd.f32 0.0, %v186
    %v188 = vpop.f32.mrb[0].mxu0
    %v189 = vpop.f32.mrb[0].mxu0
    %190 = vdwg.mxu0
    %v191 = vlaneseq
    %v192 = vand.u32 %v191, 127
    %v193 = vadd.s32 %v192, 128
    %vm194 = vcmp.lt.s32.totalorder %v192, 0
    %v195 = vsub.s32 0, %v192
    %v196 = vsel %vm194, %v195, %v192
    %v197 = vshrl.u32 %v196, 7
    %v198 = vand.u32 %v196, 127
    %v199 = vsub.s32 0, %v198
    %v200 = vsel %vm194, %v199, %v198
    %vm201 = vcmp.lt.s32.totalorder %v193, 0
    %v202 = vsub.s32 0, %v193
    %v203 = vsel %vm201, %v202, %v193
    %v204 = vshrl.u32 %v203, 7
    %v205 = vand.u32 %v203, 127
    %v206 = vsub.s32 0, %v205
    %v207 = vsel %vm201, %v206, %v205
    %vm208 = vcmp.ne.s32.totalorder %v200, 0
    %vm209 = vcmp.ne.s32.totalorder %v207, 0
    %vm210 = vcmp.lt.s32.totalorder %v200, 0
    %vm211 = vcmp.lt.s32.totalorder %v207, 0
    %vm212 = vmand %vm210, %vm208
    %vm213 = vmand %vm211, %vm209
    %v214 = vadd.s32 %v200, 128
    %v215 = vadd.s32 %v207, 128
    %v216 = vsel %vm212, %v214, %v200
    %v217 = vsel %vm213, %v215, %v207
    %vm218 = vcmp.lt.s32.totalorder %v216, 100
    %vm219 = vcmp.lt.s32.totalorder %v217, 100
    %v220 = vsel %vm218, 1, 0
    %v221 = vsel %vm219, 1, 0
    %vm222 = vcmp.eq.s32.totalorder %v220, 1
    %vm223 = vcmp.eq.s32.totalorder %v221, 1
    %v224 = vsel %vm222, %v185, 0.0
    %v225 = vsel %vm223, %v187, 0.0
    %vm226 = vcmask 1041408
    %v227 = vsel %vm226, %v224, 0.0
    %v228 = vsel %vm226, %v225, 0.0
    %v229 = vadd.f32 %v227, %v228
    %230 = vadd.xlane.f32.xlu0 %v229
    %v231 = vpop.xlane.xlu0 %230
    %v232 = vmul.f32 %v224, %v224
    %v233 = vmul.f32 %v225, %v225
    %v234 = vsel %vm226, %v232, 0.0
    %v235 = vsel %vm226, %v233, 0.0
    %v236 = vadd.f32 %v234, %v235
    %237 = vadd.xlane.f32.xlu0 %v236
    %v238 = vpop.xlane.xlu0 %237
    %v239 = vmul.f32 %v231, 0.005
    %v240 = vmul.f32 %v238, 0.005
    %v241 = vmul.f32 %v239, %v239
    %v242 = vsub.f32 %v240, %v241
    %v243 = vmax.f32 %v242, 0.0
    %v244 = vld [vmem:[%s2] sm:$0x3]
    %v245 = vadd.f32 %v243, 1e-05
    %v246 = vrsqrt.pop %v245
    %v247 = vmul.f32 %v244, %v246
    %v248 = vld [vmem:[%s3] sm:$0x3]
    %v249 = vmul.f32 %v239, %v247
    %v250 = vsub.f32 %v248, %v249
    %252 = vset.pattern.permute.xlu0 0
    %253 = vperm.xlu0 %252, %v247
    %v254 = vpop.permute.xlu0 %253
    %v256 = vmul.f32 %v185, %v254
    %v257 = vmul.f32 %v187, %v254
    %259 = vset.pattern.permute.xlu0 0
    %260 = vperm.xlu0 %259, %v250
    %v261 = vpop.permute.xlu0 %260
    %v263 = vadd.f32 %v256, %v261
    %v264 = vadd.f32 %v257, %v261
    %v265 = vmax.f32 %v263, 0.0
    %v266 = vmax.f32 %v264, 0.0
    %v268 = vrot.slane %v266, 7
    %vm270 = vcmask 1040384
    %v271 = vsel %vm270, %v265, %v268
    %v273 = vrot.slane %v265, 1
    %v275 = vsel %vm270, %v273, %v266
    %v276 = vpack.c.bf16 %v271, %v271
    %v277 = vpack.c.bf16 %v275, %v275
    %v278 = vld [vmem:[#allocation5] sm:$0xff]
    %v279 = vld [vmem:[#allocation5 + $0x8] sm:$0xff]
    %v280 = vld [vmem:[#allocation5 + $0x10] sm:$0xff]
    %v281 = vld [vmem:[#allocation5 + $0x18] sm:$0xff]
    %v282 = vld [vmem:[#allocation5 + $0x20] sm:$0xff]
    %v283 = vld [vmem:[#allocation5 + $0x28] sm:$0xff]
    %v284 = vld [vmem:[#allocation5 + $0x30] sm:$0xff]
    %v285 = vld [vmem:[#allocation5 + $0x38] sm:$0xff]
    %v286 = vld [vmem:[#allocation5 + $0x40] sm:$0xff]
    %v287 = vld [vmem:[#allocation5 + $0x48] sm:$0xff]
    %v288 = vld [vmem:[#allocation5 + $0x50] sm:$0xff]
    %v289 = vld [vmem:[#allocation5 + $0x58] sm:$0xff]
    %v290 = vld [vmem:[#allocation5 + $0x60] sm:$0xff]
    %v291 = vld [vmem:[#allocation5 + $0x68] sm:$0xff]
    %v292 = vld [vmem:[#allocation5 + $0x70] sm:$0xff]
    %v293 = vld [vmem:[#allocation5 + $0x78] sm:$0xff]
    %v294 = vld [vmem:[#allocation5 + $0x80] sm:$0xff]
    %v295 = vld [vmem:[#allocation5 + $0x88] sm:$0xff]
    %v296 = vld [vmem:[#allocation5 + $0x90] sm:$0xff]
    %v297 = vld [vmem:[#allocation5 + $0x98] sm:$0xff]
    %v298 = vld [vmem:[#allocation5 + $0xa0] sm:$0xff]
    %v299 = vld [vmem:[#allocation5 + $0xa8] sm:$0xff]
    %v300 = vld [vmem:[#allocation5 + $0xb0] sm:$0xff]
    %v301 = vld [vmem:[#allocation5 + $0xb8] sm:$0xff]
    %v302 = vld [vmem:[#allocation5 + $0xc0] sm:$0xff]
    %v303 = vld [vmem:[#allocation5 + $0xc8] sm:$0xff]
    %v304 = vld [vmem:[#allocation5 + $0xd0] sm:$0xff]
    %v305 = vld [vmem:[#allocation5 + $0xd8] sm:$0xff]
    %v306 = vld [vmem:[#allocation5 + $0xe0] sm:$0xff]
    %v307 = vld [vmem:[#allocation5 + $0xe8] sm:$0xff]
    %v308 = vld [vmem:[#allocation5 + $0xf0] sm:$0xff]
    %v309 = vld [vmem:[#allocation5 + $0xf8] sm:$0xff]
    %v310 = vld [vmem:[#allocation5 + $0x100] sm:$0xff]
    %v311 = vld [vmem:[#allocation5 + $0x108] sm:$0xff]
    %v312 = vld [vmem:[#allocation5 + $0x110] sm:$0xff]
    %v313 = vld [vmem:[#allocation5 + $0x118] sm:$0xff]
    %v314 = vld [vmem:[#allocation5 + $0x120] sm:$0xff]
    %v315 = vld [vmem:[#allocation5 + $0x128] sm:$0xff]
    %v316 = vld [vmem:[#allocation5 + $0x130] sm:$0xff]
    %v317 = vld [vmem:[#allocation5 + $0x138] sm:$0xff]
    %v318 = vld [vmem:[#allocation5 + $0x140] sm:$0xff]
    %v319 = vld [vmem:[#allocation5 + $0x148] sm:$0xff]
    %v320 = vld [vmem:[#allocation5 + $0x150] sm:$0xff]
    %v321 = vld [vmem:[#allocation5 + $0x158] sm:$0xff]
    %v322 = vld [vmem:[#allocation5 + $0x160] sm:$0xff]
    %v323 = vld [vmem:[#allocation5 + $0x168] sm:$0xff]
    %v324 = vld [vmem:[#allocation5 + $0x170] sm:$0xff]
    %v325 = vld [vmem:[#allocation5 + $0x178] sm:$0xff]
    %v326 = vld [vmem:[#allocation5 + $0x180] sm:$0xff]
    %v327 = vld [vmem:[#allocation5 + $0x188] sm:$0xff]
    %v328 = vld [vmem:[#allocation5 + $0x190] sm:$0xff]
    %v329 = vld [vmem:[#allocation5 + $0x198] sm:$0xff]
    %v330 = vld [vmem:[#allocation5 + $0x1a0] sm:$0xff]
    %v331 = vld [vmem:[#allocation5 + $0x1a8] sm:$0xff]
    %v332 = vld [vmem:[#allocation5 + $0x1b0] sm:$0xff]
    %v333 = vld [vmem:[#allocation5 + $0x1b8] sm:$0xff]
    %v334 = vld [vmem:[#allocation5 + $0x1c0] sm:$0xff]
    %v335 = vld [vmem:[#allocation5 + $0x1c8] sm:$0xff]
    %v336 = vld [vmem:[#allocation5 + $0x1d0] sm:$0xff]
    %v337 = vld [vmem:[#allocation5 + $0x1d8] sm:$0xff]
    %v338 = vld [vmem:[#allocation5 + $0x1e0] sm:$0xff]
    %v339 = vld [vmem:[#allocation5 + $0x1e8] sm:$0xff]
    %v340 = vld [vmem:[#allocation5 + $0x1f0] sm:$0xff]
    %v341 = vld [vmem:[#allocation5 + $0x1f8] sm:$0xff]
    %v342 = vld [vmem:[#allocation5 + $0x200] sm:$0xff]
    %v343 = vld [vmem:[#allocation5 + $0x208] sm:$0xff]
    %v344 = vld [vmem:[#allocation5 + $0x210] sm:$0xff]
    %v345 = vld [vmem:[#allocation5 + $0x218] sm:$0xff]
    %v346 = vld [vmem:[#allocation5 + $0x220] sm:$0xff]
    %v347 = vld [vmem:[#allocation5 + $0x228] sm:$0xff]
    %v348 = vld [vmem:[#allocation5 + $0x230] sm:$0xff]
    %v349 = vld [vmem:[#allocation5 + $0x238] sm:$0xff]
    %v350 = vld [vmem:[#allocation5 + $0x240] sm:$0xff]
    %v351 = vld [vmem:[#allocation5 + $0x248] sm:$0xff]
    %v352 = vld [vmem:[#allocation5 + $0x250] sm:$0xff]
    %v353 = vld [vmem:[#allocation5 + $0x258] sm:$0xff]
    %v354 = vld [vmem:[#allocation5 + $0x260] sm:$0xff]
    %v355 = vld [vmem:[#allocation5 + $0x268] sm:$0xff]
    %v356 = vld [vmem:[#allocation5 + $0x270] sm:$0xff]
    %v357 = vld [vmem:[#allocation5 + $0x278] sm:$0xff]
    %v358 = vld [vmem:[#allocation5 + $0x280] sm:$0xff]
    %v359 = vld [vmem:[#allocation5 + $0x288] sm:$0xff]
    %v360 = vld [vmem:[#allocation5 + $0x290] sm:$0xff]
    %v361 = vld [vmem:[#allocation5 + $0x298] sm:$0xff]
    %v362 = vld [vmem:[#allocation5 + $0x2a0] sm:$0xff]
    %v363 = vld [vmem:[#allocation5 + $0x2a8] sm:$0xff]
    %v364 = vld [vmem:[#allocation5 + $0x2b0] sm:$0xff]
    %v365 = vld [vmem:[#allocation5 + $0x2b8] sm:$0xff]
    %v366 = vld [vmem:[#allocation5 + $0x2c0] sm:$0xff]
    %v367 = vld [vmem:[#allocation5 + $0x2c8] sm:$0xff]
    %v368 = vld [vmem:[#allocation5 + $0x2d0] sm:$0xff]
    %v369 = vld [vmem:[#allocation5 + $0x2d8] sm:$0xff]
    %v370 = vld [vmem:[#allocation5 + $0x2e0] sm:$0xff]
    %v371 = vld [vmem:[#allocation5 + $0x2e8] sm:$0xff]
    %v372 = vld [vmem:[#allocation5 + $0x2f0] sm:$0xff]
    %v373 = vld [vmem:[#allocation5 + $0x2f8] sm:$0xff]
    %v374 = vld [vmem:[#allocation5 + $0x300] sm:$0xff]
    %v375 = vld [vmem:[#allocation5 + $0x308] sm:$0xff]
    %v376 = vld [vmem:[#allocation5 + $0x310] sm:$0xff]
    %v377 = vld [vmem:[#allocation5 + $0x318] sm:$0xff]
    %v378 = vld [vmem:[#allocation5 + $0x320] sm:$0xff]
    %v379 = vld [vmem:[#allocation5 + $0x328] sm:$0xff]
    %v380 = vld [vmem:[#allocation5 + $0x330] sm:$0xff]
    %v381 = vld [vmem:[#allocation5 + $0x338] sm:$0xff]
    %v382 = vld [vmem:[#allocation5 + $0x340] sm:$0xff]
    %v383 = vld [vmem:[#allocation5 + $0x348] sm:$0xff]
    %v384 = vld [vmem:[#allocation5 + $0x350] sm:$0xff]
    %v385 = vld [vmem:[#allocation5 + $0x358] sm:$0xff]
    %v386 = vld [vmem:[#allocation5 + $0x360] sm:$0xff]
    %v387 = vld [vmem:[#allocation5 + $0x368] sm:$0xff]
    %v388 = vld [vmem:[#allocation5 + $0x370] sm:$0xff]
    %v389 = vld [vmem:[#allocation5 + $0x378] sm:$0xff]
    %v390 = vld [vmem:[#allocation5 + $0x380] sm:$0xff]
    %v391 = vld [vmem:[#allocation5 + $0x388] sm:$0xff]
    %v392 = vld [vmem:[#allocation5 + $0x390] sm:$0xff]
    %v393 = vld [vmem:[#allocation5 + $0x398] sm:$0xff]
    %v394 = vld [vmem:[#allocation5 + $0x3a0] sm:$0xff]
    %v395 = vld [vmem:[#allocation5 + $0x3a8] sm:$0xff]
    %v396 = vld [vmem:[#allocation5 + $0x3b0] sm:$0xff]
    %v397 = vld [vmem:[#allocation5 + $0x3b8] sm:$0xff]
    %v398 = vld [vmem:[#allocation5 + $0x3c0] sm:$0xff]
    %v399 = vld [vmem:[#allocation5 + $0x3c8] sm:$0xff]
    %v400 = vld [vmem:[#allocation5 + $0x3d0] sm:$0xff]
    %v401 = vld [vmem:[#allocation5 + $0x3d8] sm:$0xff]
    %v402 = vld [vmem:[#allocation5 + $0x3e0] sm:$0xff]
    %v403 = vld [vmem:[#allocation5 + $0x3e8] sm:$0xff]
    %v404 = vld [vmem:[#allocation5 + $0x3f0] sm:$0xff]
    %v405 = vld [vmem:[#allocation5 + $0x3f8] sm:$0xff]
    %v406 = vld [vmem:[%s5] sm:$0xff]
    %v408 = vlaneseq
    %v409 = vshrl.u32 %v408, 7
    %v410 = vsub.s32 0, %v409
    %v411 = vrot.slane %v406, %v410
    %v412 = vlaneseq
    %v413 = vshrl.u32 %v412, 7
    %v414 = vsub.s32 1, %v413
    %v415 = vrot.slane %v406, %v414
    %v416 = vlaneseq
    %v417 = vshrl.u32 %v416, 7
    %v418 = vsub.s32 2, %v417
    %v419 = vrot.slane %v406, %v418
    %v420 = vlaneseq
    %v421 = vshrl.u32 %v420, 7
    %v422 = vsub.s32 3, %v421
    %v423 = vrot.slane %v406, %v422
    %v424 = vlaneseq
    %v425 = vshrl.u32 %v424, 7
    %v426 = vsub.s32 4, %v425
    %v427 = vrot.slane %v406, %v426
    %v428 = vlaneseq
    %v429 = vshrl.u32 %v428, 7
    %v430 = vsub.s32 5, %v429
    %v431 = vrot.slane %v406, %v430
    %v432 = vlaneseq
    %v433 = vshrl.u32 %v432, 7
    %v434 = vsub.s32 6, %v433
    %v435 = vrot.slane %v406, %v434
    %v436 = vlaneseq
    %v437 = vshrl.u32 %v436, 7
    %v438 = vsub.s32 7, %v437
    %v439 = vrot.slane %v406, %v438
    %v576 = vunpack.c.l.b16 %v278
    %v577 = vunpack.c.h.b16 %v278
    %v578 = vunpack.c.l.b16 %v279
    %v579 = vunpack.c.h.b16 %v279
    %v580 = vunpack.c.l.b16 %v280
    %v581 = vunpack.c.h.b16 %v280
    %v582 = vunpack.c.l.b16 %v281
    %v583 = vunpack.c.h.b16 %v281
    %v584 = vunpack.c.l.b16 %v282
    %v585 = vunpack.c.h.b16 %v282
    %v586 = vunpack.c.l.b16 %v283
    %v587 = vunpack.c.h.b16 %v283
    %v588 = vunpack.c.l.b16 %v284
    %v589 = vunpack.c.h.b16 %v284
    %v590 = vunpack.c.l.b16 %v285
    %v591 = vunpack.c.h.b16 %v285
    %v592 = vunpack.c.l.b16 %v286
    %v593 = vunpack.c.h.b16 %v286
    %v594 = vunpack.c.l.b16 %v287
    %v595 = vunpack.c.h.b16 %v287
    %v596 = vunpack.c.l.b16 %v288
    %v597 = vunpack.c.h.b16 %v288
    %v598 = vunpack.c.l.b16 %v289
    %v599 = vunpack.c.h.b16 %v289
    %v600 = vunpack.c.l.b16 %v290
    %v601 = vunpack.c.h.b16 %v290
    %v602 = vunpack.c.l.b16 %v291
    %v603 = vunpack.c.h.b16 %v291
    %v604 = vunpack.c.l.b16 %v292
    %v605 = vunpack.c.h.b16 %v292
    %v606 = vunpack.c.l.b16 %v293
    %v607 = vunpack.c.h.b16 %v293
    %v608 = vunpack.c.l.b16 %v294
    %v609 = vunpack.c.h.b16 %v294
    %v610 = vunpack.c.l.b16 %v295
    %v611 = vunpack.c.h.b16 %v295
    %v612 = vunpack.c.l.b16 %v296
    %v613 = vunpack.c.h.b16 %v296
    %v614 = vunpack.c.l.b16 %v297
    %v615 = vunpack.c.h.b16 %v297
    %v616 = vunpack.c.l.b16 %v298
    %v617 = vunpack.c.h.b16 %v298
    %v618 = vunpack.c.l.b16 %v299
    %v619 = vunpack.c.h.b16 %v299
    %v620 = vunpack.c.l.b16 %v300
    %v621 = vunpack.c.h.b16 %v300
    %v622 = vunpack.c.l.b16 %v301
    %v623 = vunpack.c.h.b16 %v301
    %v624 = vunpack.c.l.b16 %v302
    %v625 = vunpack.c.h.b16 %v302
    %v626 = vunpack.c.l.b16 %v303
    %v627 = vunpack.c.h.b16 %v303
    %v628 = vunpack.c.l.b16 %v304
    %v629 = vunpack.c.h.b16 %v304
    %v630 = vunpack.c.l.b16 %v305
    %v631 = vunpack.c.h.b16 %v305
    %v632 = vunpack.c.l.b16 %v306
    %v633 = vunpack.c.h.b16 %v306
    %v634 = vunpack.c.l.b16 %v307
    %v635 = vunpack.c.h.b16 %v307
    %v636 = vunpack.c.l.b16 %v308
    %v637 = vunpack.c.h.b16 %v308
    %v638 = vunpack.c.l.b16 %v309
    %v639 = vunpack.c.h.b16 %v309
    %v640 = vunpack.c.l.b16 %v310
    %v641 = vunpack.c.h.b16 %v310
    %v642 = vunpack.c.l.b16 %v311
    %v643 = vunpack.c.h.b16 %v311
    %v644 = vunpack.c.l.b16 %v312
    %v645 = vunpack.c.h.b16 %v312
    %v646 = vunpack.c.l.b16 %v313
    %v647 = vunpack.c.h.b16 %v313
    %v648 = vunpack.c.l.b16 %v314
    %v649 = vunpack.c.h.b16 %v314
    %v650 = vunpack.c.l.b16 %v315
    %v651 = vunpack.c.h.b16 %v315
    %v652 = vunpack.c.l.b16 %v316
    %v653 = vunpack.c.h.b16 %v316
    %v654 = vunpack.c.l.b16 %v317
    %v655 = vunpack.c.h.b16 %v317
    %v656 = vunpack.c.l.b16 %v318
    %v657 = vunpack.c.h.b16 %v318
    %v658 = vunpack.c.l.b16 %v319
    %v659 = vunpack.c.h.b16 %v319
    %v660 = vunpack.c.l.b16 %v320
    %v661 = vunpack.c.h.b16 %v320
    %v662 = vunpack.c.l.b16 %v321
    %v663 = vunpack.c.h.b16 %v321
    %v664 = vunpack.c.l.b16 %v322
    %v665 = vunpack.c.h.b16 %v322
    %v666 = vunpack.c.l.b16 %v323
    %v667 = vunpack.c.h.b16 %v323
    %v668 = vunpack.c.l.b16 %v324
    %v669 = vunpack.c.h.b16 %v324
    %v670 = vunpack.c.l.b16 %v325
    %v671 = vunpack.c.h.b16 %v325
    %v672 = vunpack.c.l.b16 %v326
    %v673 = vunpack.c.h.b16 %v326
    %v674 = vunpack.c.l.b16 %v327
    %v675 = vunpack.c.h.b16 %v327
    %v676 = vunpack.c.l.b16 %v328
    %v677 = vunpack.c.h.b16 %v328
    %v678 = vunpack.c.l.b16 %v329
    %v679 = vunpack.c.h.b16 %v329
    %v680 = vunpack.c.l.b16 %v330
    %v681 = vunpack.c.h.b16 %v330
    %v682 = vunpack.c.l.b16 %v331
    %v683 = vunpack.c.h.b16 %v331
    %v684 = vunpack.c.l.b16 %v332
    %v685 = vunpack.c.h.b16 %v332
    %v686 = vunpack.c.l.b16 %v333
    %v687 = vunpack.c.h.b16 %v333
    %v688 = vunpack.c.l.b16 %v334
    %v689 = vunpack.c.h.b16 %v334
    %v690 = vunpack.c.l.b16 %v335
    %v691 = vunpack.c.h.b16 %v335
    %v692 = vunpack.c.l.b16 %v336
    %v693 = vunpack.c.h.b16 %v336
    %v694 = vunpack.c.l.b16 %v337
    %v695 = vunpack.c.h.b16 %v337
    %v696 = vunpack.c.l.b16 %v338
    %v697 = vunpack.c.h.b16 %v338
    %v698 = vunpack.c.l.b16 %v339
    %v699 = vunpack.c.h.b16 %v339
    %v700 = vunpack.c.l.b16 %v340
    %v701 = vunpack.c.h.b16 %v340
    %v702 = vunpack.c.l.b16 %v341
    %v703 = vunpack.c.h.b16 %v341
    %v704 = vunpack.c.l.b16 %v342
    %v705 = vunpack.c.h.b16 %v342
    %v706 = vunpack.c.l.b16 %v343
    %v707 = vunpack.c.h.b16 %v343
    %v708 = vunpack.c.l.b16 %v344
    %v709 = vunpack.c.h.b16 %v344
    %v710 = vunpack.c.l.b16 %v345
    %v711 = vunpack.c.h.b16 %v345
    %v712 = vunpack.c.l.b16 %v346
    %v713 = vunpack.c.h.b16 %v346
    %v714 = vunpack.c.l.b16 %v347
    %v715 = vunpack.c.h.b16 %v347
    %v716 = vunpack.c.l.b16 %v348
    %v717 = vunpack.c.h.b16 %v348
    %v718 = vunpack.c.l.b16 %v349
    %v719 = vunpack.c.h.b16 %v349
    %v720 = vunpack.c.l.b16 %v350
    %v721 = vunpack.c.h.b16 %v350
    %v722 = vunpack.c.l.b16 %v351
    %v723 = vunpack.c.h.b16 %v351
    %v724 = vunpack.c.l.b16 %v352
    %v725 = vunpack.c.h.b16 %v352
    %v726 = vunpack.c.l.b16 %v353
    %v727 = vunpack.c.h.b16 %v353
    %v728 = vunpack.c.l.b16 %v354
    %v729 = vunpack.c.h.b16 %v354
    %v730 = vunpack.c.l.b16 %v355
    %v731 = vunpack.c.h.b16 %v355
    %v732 = vunpack.c.l.b16 %v356
    %v733 = vunpack.c.h.b16 %v356
    %v734 = vunpack.c.l.b16 %v357
    %v735 = vunpack.c.h.b16 %v357
    %v736 = vunpack.c.l.b16 %v358
    %v737 = vunpack.c.h.b16 %v358
    %v738 = vunpack.c.l.b16 %v359
    %v739 = vunpack.c.h.b16 %v359
    %v740 = vunpack.c.l.b16 %v360
    %v741 = vunpack.c.h.b16 %v360
    %v742 = vunpack.c.l.b16 %v361
    %v743 = vunpack.c.h.b16 %v361
    %v744 = vunpack.c.l.b16 %v362
    %v745 = vunpack.c.h.b16 %v362
    %v746 = vunpack.c.l.b16 %v363
    %v747 = vunpack.c.h.b16 %v363
    %v748 = vunpack.c.l.b16 %v364
    %v749 = vunpack.c.h.b16 %v364
    %v750 = vunpack.c.l.b16 %v365
    %v751 = vunpack.c.h.b16 %v365
    %v752 = vunpack.c.l.b16 %v366
    %v753 = vunpack.c.h.b16 %v366
    %v754 = vunpack.c.l.b16 %v367
    %v755 = vunpack.c.h.b16 %v367
    %v756 = vunpack.c.l.b16 %v368
    %v757 = vunpack.c.h.b16 %v368
    %v758 = vunpack.c.l.b16 %v369
    %v759 = vunpack.c.h.b16 %v369
    %v760 = vunpack.c.l.b16 %v370
    %v761 = vunpack.c.h.b16 %v370
    %v762 = vunpack.c.l.b16 %v371
    %v763 = vunpack.c.h.b16 %v371
    %v764 = vunpack.c.l.b16 %v372
    %v765 = vunpack.c.h.b16 %v372
    %v766 = vunpack.c.l.b16 %v373
    %v767 = vunpack.c.h.b16 %v373
    %v768 = vunpack.c.l.b16 %v374
    %v769 = vunpack.c.h.b16 %v374
    %v770 = vunpack.c.l.b16 %v375
    %v771 = vunpack.c.h.b16 %v375
    %v772 = vunpack.c.l.b16 %v376
    %v773 = vunpack.c.h.b16 %v376
    %v774 = vunpack.c.l.b16 %v377
    %v775 = vunpack.c.h.b16 %v377
    %v776 = vunpack.c.l.b16 %v378
    %v777 = vunpack.c.h.b16 %v378
    %v778 = vunpack.c.l.b16 %v379
    %v779 = vunpack.c.h.b16 %v379
    %v780 = vunpack.c.l.b16 %v380
    %v781 = vunpack.c.h.b16 %v380
    %v782 = vunpack.c.l.b16 %v381
    %v783 = vunpack.c.h.b16 %v381
    %v784 = vunpack.c.l.b16 %v382
    %v785 = vunpack.c.h.b16 %v382
    %v786 = vunpack.c.l.b16 %v383
    %v787 = vunpack.c.h.b16 %v383
    %v788 = vunpack.c.l.b16 %v384
    %v789 = vunpack.c.h.b16 %v384
    %v790 = vunpack.c.l.b16 %v385
    %v791 = vunpack.c.h.b16 %v385
    %v792 = vunpack.c.l.b16 %v386
    %v793 = vunpack.c.h.b16 %v386
    %v794 = vunpack.c.l.b16 %v387
    %v795 = vunpack.c.h.b16 %v387
    %v796 = vunpack.c.l.b16 %v388
    %v797 = vunpack.c.h.b16 %v388
    %v798 = vunpack.c.l.b16 %v389
    %v799 = vunpack.c.h.b16 %v389
    %v800 = vunpack.c.l.b16 %v390
    %v801 = vunpack.c.h.b16 %v390
    %v802 = vunpack.c.l.b16 %v391
    %v803 = vunpack.c.h.b16 %v391
    %v804 = vunpack.c.l.b16 %v392
    %v805 = vunpack.c.h.b16 %v392
    %v806 = vunpack.c.l.b16 %v393
    %v807 = vunpack.c.h.b16 %v393
    %v808 = vunpack.c.l.b16 %v394
    %v809 = vunpack.c.h.b16 %v394
    %v810 = vunpack.c.l.b16 %v395
    %v811 = vunpack.c.h.b16 %v395
    %v812 = vunpack.c.l.b16 %v396
    %v813 = vunpack.c.h.b16 %v396
    %v814 = vunpack.c.l.b16 %v397
    %v815 = vunpack.c.h.b16 %v397
    %v816 = vunpack.c.l.b16 %v398
    %v817 = vunpack.c.h.b16 %v398
    %v818 = vunpack.c.l.b16 %v399
    %v819 = vunpack.c.h.b16 %v399
    %v820 = vunpack.c.l.b16 %v400
    %v821 = vunpack.c.h.b16 %v400
    %v822 = vunpack.c.l.b16 %v401
    %v823 = vunpack.c.h.b16 %v401
    %v824 = vunpack.c.l.b16 %v402
    %v825 = vunpack.c.h.b16 %v402
    %v826 = vunpack.c.l.b16 %v403
    %v827 = vunpack.c.h.b16 %v403
    %v828 = vunpack.c.l.b16 %v404
    %v829 = vunpack.c.h.b16 %v404
    %v830 = vunpack.c.l.b16 %v405
    %v831 = vunpack.c.h.b16 %v405
    %v832 = vpack.c.b16 %v584, %v576
    %v833 = vpack.c.b16 %v585, %v577
    %v834 = vpack.c.b16 %v586, %v578
    %v835 = vpack.c.b16 %v587, %v579
    %v836 = vpack.c.b16 %v588, %v580
    %v837 = vpack.c.b16 %v589, %v581
    %v838 = vpack.c.b16 %v590, %v582
    %v839 = vpack.c.b16 %v591, %v583
    %v840 = vpack.c.b16 %v600, %v592
    %v841 = vpack.c.b16 %v601, %v593
    %v842 = vpack.c.b16 %v602, %v594
    %v843 = vpack.c.b16 %v603, %v595
    %v844 = vpack.c.b16 %v604, %v596
    %v845 = vpack.c.b16 %v605, %v597
    %v846 = vpack.c.b16 %v606, %v598
    %v847 = vpack.c.b16 %v607, %v599
    %v848 = vpack.c.b16 %v616, %v608
    %v849 = vpack.c.b16 %v617, %v609
    %v850 = vpack.c.b16 %v618, %v610
    %v851 = vpack.c.b16 %v619, %v611
    %v852 = vpack.c.b16 %v620, %v612
    %v853 = vpack.c.b16 %v621, %v613
    %v854 = vpack.c.b16 %v622, %v614
    %v855 = vpack.c.b16 %v623, %v615
    %v856 = vpack.c.b16 %v632, %v624
    %v857 = vpack.c.b16 %v633, %v625
    %v858 = vpack.c.b16 %v634, %v626
    %v859 = vpack.c.b16 %v635, %v627
    %v860 = vpack.c.b16 %v636, %v628
    %v861 = vpack.c.b16 %v637, %v629
    %v862 = vpack.c.b16 %v638, %v630
    %v863 = vpack.c.b16 %v639, %v631
    %v864 = vpack.c.b16 %v648, %v640
    %v865 = vpack.c.b16 %v649, %v641
    %v866 = vpack.c.b16 %v650, %v642
    %v867 = vpack.c.b16 %v651, %v643
    %v868 = vpack.c.b16 %v652, %v644
    %v869 = vpack.c.b16 %v653, %v645
    %v870 = vpack.c.b16 %v654, %v646
    %v871 = vpack.c.b16 %v655, %v647
    %v872 = vpack.c.b16 %v664, %v656
    %v873 = vpack.c.b16 %v665, %v657
    %v874 = vpack.c.b16 %v666, %v658
    %v875 = vpack.c.b16 %v667, %v659
    %v876 = vpack.c.b16 %v668, %v660
    %v877 = vpack.c.b16 %v669, %v661
    %v878 = vpack.c.b16 %v670, %v662
    %v879 = vpack.c.b16 %v671, %v663
    %v880 = vpack.c.b16 %v680, %v672
    %v881 = vpack.c.b16 %v681, %v673
    %v882 = vpack.c.b16 %v682, %v674
    %v883 = vpack.c.b16 %v683, %v675
    %v884 = vpack.c.b16 %v684, %v676
    %v885 = vpack.c.b16 %v685, %v677
    %v886 = vpack.c.b16 %v686, %v678
    %v887 = vpack.c.b16 %v687, %v679
    %v888 = vpack.c.b16 %v696, %v688
    %v889 = vpack.c.b16 %v697, %v689
    %v890 = vpack.c.b16 %v698, %v690
    %v891 = vpack.c.b16 %v699, %v691
    %v892 = vpack.c.b16 %v700, %v692
    %v893 = vpack.c.b16 %v701, %v693
    %v894 = vpack.c.b16 %v702, %v694
    %v895 = vpack.c.b16 %v703, %v695
    %v896 = vpack.c.b16 %v712, %v704
    %v897 = vpack.c.b16 %v713, %v705
    %v898 = vpack.c.b16 %v714, %v706
    %v899 = vpack.c.b16 %v715, %v707
    %v900 = vpack.c.b16 %v716, %v708
    %v901 = vpack.c.b16 %v717, %v709
    %v902 = vpack.c.b16 %v718, %v710
    %v903 = vpack.c.b16 %v719, %v711
    %v904 = vpack.c.b16 %v728, %v720
    %v905 = vpack.c.b16 %v729, %v721
    %v906 = vpack.c.b16 %v730, %v722
    %v907 = vpack.c.b16 %v731, %v723
    %v908 = vpack.c.b16 %v732, %v724
    %v909 = vpack.c.b16 %v733, %v725
    %v910 = vpack.c.b16 %v734, %v726
    %v911 = vpack.c.b16 %v735, %v727
    %v912 = vpack.c.b16 %v744, %v736
    %v913 = vpack.c.b16 %v745, %v737
    %v914 = vpack.c.b16 %v746, %v738
    %v915 = vpack.c.b16 %v747, %v739
    %v916 = vpack.c.b16 %v748, %v740
    %v917 = vpack.c.b16 %v749, %v741
    %v918 = vpack.c.b16 %v750, %v742
    %v919 = vpack.c.b16 %v751, %v743
    %v920 = vpack.c.b16 %v760, %v752
    %v921 = vpack.c.b16 %v761, %v753
    %v922 = vpack.c.b16 %v762, %v754
    %v923 = vpack.c.b16 %v763, %v755
    %v924 = vpack.c.b16 %v764, %v756
    %v925 = vpack.c.b16 %v765, %v757
    %v926 = vpack.c.b16 %v766, %v758
    %v927 = vpack.c.b16 %v767, %v759
    %v928 = vpack.c.b16 %v776, %v768
    %v929 = vpack.c.b16 %v777, %v769
    %v930 = vpack.c.b16 %v778, %v770
    %v931 = vpack.c.b16 %v779, %v771
    %v932 = vpack.c.b16 %v780, %v772
    %v933 = vpack.c.b16 %v781, %v773
    %v934 = vpack.c.b16 %v782, %v774
    %v935 = vpack.c.b16 %v783, %v775
    %v936 = vpack.c.b16 %v792, %v784
    %v937 = vpack.c.b16 %v793, %v785
    %v938 = vpack.c.b16 %v794, %v786
    %v939 = vpack.c.b16 %v795, %v787
    %v940 = vpack.c.b16 %v796, %v788
    %v941 = vpack.c.b16 %v797, %v789
    %v942 = vpack.c.b16 %v798, %v790
    %v943 = vpack.c.b16 %v799, %v791
    %v944 = vpack.c.b16 %v808, %v800
    %v945 = vpack.c.b16 %v809, %v801
    %v946 = vpack.c.b16 %v810, %v802
    %v947 = vpack.c.b16 %v811, %v803
    %v948 = vpack.c.b16 %v812, %v804
    %v949 = vpack.c.b16 %v813, %v805
    %v950 = vpack.c.b16 %v814, %v806
    %v951 = vpack.c.b16 %v815, %v807
    %v952 = vpack.c.b16 %v824, %v816
    %v953 = vpack.c.b16 %v825, %v817
    %v954 = vpack.c.b16 %v826, %v818
    %v955 = vpack.c.b16 %v827, %v819
    %v956 = vpack.c.b16 %v828, %v820
    %v957 = vpack.c.b16 %v829, %v821
    %v958 = vpack.c.b16 %v830, %v822
    %v959 = vpack.c.b16 %v831, %v823
    %1088 = vmatprep.subr.bf16.mxu0 %v833
    %1089 = vmatpush1.bf16.msra.mxu0 %v832
    %1090 = vmatprep.subr.bf16.mxu0 %v841
    %1091 = vmatpush1.bf16.msra.mxu0 %v840
    %1092 = vmatprep.subr.bf16.mxu0 %v849
    %1093 = vmatpush1.bf16.msra.mxu0 %v848
    %1094 = vmatprep.subr.bf16.mxu0 %v857
    %1095 = vmatpush1.bf16.msra.mxu0 %v856
    %1096 = vmatprep.subr.bf16.mxu0 %v865
    %1097 = vmatpush1.bf16.msra.mxu0 %v864
    %1098 = vmatprep.subr.bf16.mxu0 %v873
    %1099 = vmatpush1.bf16.msra.mxu0 %v872
    %1100 = vmatprep.subr.bf16.mxu0 %v881
    %1101 = vmatpush1.bf16.msra.mxu0 %v880
    %1102 = vmatprep.subr.bf16.mxu0 %v889
    %1103 = vmatpush1.bf16.msra.mxu0 %v888
    %1104 = vmatprep.subr.bf16.mxu0 %v897
    %1105 = vmatpush1.bf16.msra.mxu0 %v896
    %1106 = vmatprep.subr.bf16.mxu0 %v905
    %1107 = vmatpush1.bf16.msra.mxu0 %v904
    %1108 = vmatprep.subr.bf16.mxu0 %v913
    %1109 = vmatpush1.bf16.msra.mxu0 %v912
    %1110 = vmatprep.subr.bf16.mxu0 %v921
    %1111 = vmatpush1.bf16.msra.mxu0 %v920
    %1112 = vmatprep.subr.bf16.mxu0 %v929
    %1113 = vmatpush1.bf16.msra.mxu0 %v928
    %1114 = vmatprep.subr.bf16.mxu0 %v937
    %1115 = vmatpush1.bf16.msra.mxu0 %v936
    %1116 = vmatprep.subr.bf16.mxu0 %v945
    %1117 = vmatpush1.bf16.msra.mxu0 %v944
    %1118 = vmatprep.subr.bf16.mxu0 %v953
    %1119 = vmatpush1.bf16.msra.mxu0 %v952
    %1120 = vmatprep.mubr.bf16.mxu0 %v277
    %1121 = vmatmul.mubr.bf16.gmra.mrb[0].mxu0 %v276
    %v1122 = vpop.f32.mrb[0].mxu0
    %v1123 = vadd.f32 %v411, %v1122
    %v1124 = vpop.f32.mrb[0].mxu0
    %v1125 = vadd.f32 %v415, %v1124
    %v1126 = vpop.f32.mrb[0].mxu0
    %v1127 = vpop.f32.mrb[0].mxu0
    %1128 = vdwg.mxu0
    %1129 = vmatprep.subr.bf16.mxu0 %v835
    %1130 = vmatpush1.bf16.msra.mxu0 %v834
    %1131 = vmatprep.subr.bf16.mxu0 %v843
    %1132 = vmatpush1.bf16.msra.mxu0 %v842
    %1133 = vmatprep.subr.bf16.mxu0 %v851
    %1134 = vmatpush1.bf16.msra.mxu0 %v850
    %1135 = vmatprep.subr.bf16.mxu0 %v859
    %1136 = vmatpush1.bf16.msra.mxu0 %v858
    %1137 = vmatprep.subr.bf16.mxu0 %v867
    %1138 = vmatpush1.bf16.msra.mxu0 %v866
    %1139 = vmatprep.subr.bf16.mxu0 %v875
    %1140 = vmatpush1.bf16.msra.mxu0 %v874
    %1141 = vmatprep.subr.bf16.mxu0 %v883
    %1142 = vmatpush1.bf16.msra.mxu0 %v882
    %1143 = vmatprep.subr.bf16.mxu0 %v891
    %1144 = vmatpush1.bf16.msra.mxu0 %v890
    %1145 = vmatprep.subr.bf16.mxu0 %v899
    %1146 = vmatpush1.bf16.msra.mxu0 %v898
    %1147 = vmatprep.subr.bf16.mxu0 %v907
    %1148 = vmatpush1.bf16.msra.mxu0 %v906
    %1149 = vmatprep.subr.bf16.mxu0 %v915
    %1150 = vmatpush1.bf16.msra.mxu0 %v914
    %1151 = vmatprep.subr.bf16.mxu0 %v923
    %1152 = vmatpush1.bf16.msra.mxu0 %v922
    %1153 = vmatprep.subr.bf16.mxu0 %v931
    %1154 = vmatpush1.bf16.msra.mxu0 %v930
    %1155 = vmatprep.subr.bf16.mxu0 %v939
    %1156 = vmatpush1.bf16.msra.mxu0 %v938
    %1157 = vmatprep.subr.bf16.mxu0 %v947
    %1158 = vmatpush1.bf16.msra.mxu0 %v946
    %1159 = vmatprep.subr.bf16.mxu0 %v955
    %1160 = vmatpush1.bf16.msra.mxu0 %v954
    %1161 = vmatprep.mubr.bf16.mxu0 %v277
    %1162 = vmatmul.mubr.bf16.gmra.mrb[0].mxu0 %v276
    %v1163 = vpop.f32.mrb[0].mxu0
    %v1164 = vadd.f32 %v419, %v1163
    %v1165 = vpop.f32.mrb[0].mxu0
    %v1166 = vadd.f32 %v423, %v1165
    %v1167 = vpop.f32.mrb[0].mxu0
    %v1168 = vpop.f32.mrb[0].mxu0
    %1169 = vdwg.mxu0
    %1170 = vmatprep.subr.bf16.mxu0 %v837
    %1171 = vmatpush1.bf16.msra.mxu0 %v836
    %1172 = vmatprep.subr.bf16.mxu0 %v845
    %1173 = vmatpush1.bf16.msra.mxu0 %v844
    %1174 = vmatprep.subr.bf16.mxu0 %v853
    %1175 = vmatpush1.bf16.msra.mxu0 %v852
    %1176 = vmatprep.subr.bf16.mxu0 %v861
    %1177 = vmatpush1.bf16.msra.mxu0 %v860
    %1178 = vmatprep.subr.bf16.mxu0 %v869
    %1179 = vmatpush1.bf16.msra.mxu0 %v868
    %1180 = vmatprep.subr.bf16.mxu0 %v877
    %1181 = vmatpush1.bf16.msra.mxu0 %v876
    %1182 = vmatprep.subr.bf16.mxu0 %v885
    %1183 = vmatpush1.bf16.msra.mxu0 %v884
    %1184 = vmatprep.subr.bf16.mxu0 %v893
    %1185 = vmatpush1.bf16.msra.mxu0 %v892
    %1186 = vmatprep.subr.bf16.mxu0 %v901
    %1187 = vmatpush1.bf16.msra.mxu0 %v900
    %1188 = vmatprep.subr.bf16.mxu0 %v909
    %1189 = vmatpush1.bf16.msra.mxu0 %v908
    %1190 = vmatprep.subr.bf16.mxu0 %v917
    %1191 = vmatpush1.bf16.msra.mxu0 %v916
    %1192 = vmatprep.subr.bf16.mxu0 %v925
    %1193 = vmatpush1.bf16.msra.mxu0 %v924
    %1194 = vmatprep.subr.bf16.mxu0 %v933
    %1195 = vmatpush1.bf16.msra.mxu0 %v932
    %1196 = vmatprep.subr.bf16.mxu0 %v941
    %1197 = vmatpush1.bf16.msra.mxu0 %v940
    %1198 = vmatprep.subr.bf16.mxu0 %v949
    %1199 = vmatpush1.bf16.msra.mxu0 %v948
    %1200 = vmatprep.subr.bf16.mxu0 %v957
    %1201 = vmatpush1.bf16.msra.mxu0 %v956
    %1202 = vmatprep.mubr.bf16.mxu0 %v277
    %1203 = vmatmul.mubr.bf16.gmra.mrb[0].mxu0 %v276
    %v1204 = vpop.f32.mrb[0].mxu0
    %v1205 = vadd.f32 %v427, %v1204
    %v1206 = vpop.f32.mrb[0].mxu0
    %v1207 = vadd.f32 %v431, %v1206
    %v1208 = vpop.f32.mrb[0].mxu0
    %v1209 = vpop.f32.mrb[0].mxu0
    %1210 = vdwg.mxu0
    %1211 = vmatprep.subr.bf16.mxu0 %v839
    %1212 = vmatpush1.bf16.msra.mxu0 %v838
    %1213 = vmatprep.subr.bf16.mxu0 %v847
    %1214 = vmatpush1.bf16.msra.mxu0 %v846
    %1215 = vmatprep.subr.bf16.mxu0 %v855
    %1216 = vmatpush1.bf16.msra.mxu0 %v854
    %1217 = vmatprep.subr.bf16.mxu0 %v863
    %1218 = vmatpush1.bf16.msra.mxu0 %v862
    %1219 = vmatprep.subr.bf16.mxu0 %v871
    %1220 = vmatpush1.bf16.msra.mxu0 %v870
    %1221 = vmatprep.subr.bf16.mxu0 %v879
    %1222 = vmatpush1.bf16.msra.mxu0 %v878
    %1223 = vmatprep.subr.bf16.mxu0 %v887
    %1224 = vmatpush1.bf16.msra.mxu0 %v886
    %1225 = vmatprep.subr.bf16.mxu0 %v895
    %1226 = vmatpush1.bf16.msra.mxu0 %v894
    %1227 = vmatprep.subr.bf16.mxu0 %v903
    %1228 = vmatpush1.bf16.msra.mxu0 %v902
    %1229 = vmatprep.subr.bf16.mxu0 %v911
    %1230 = vmatpush1.bf16.msra.mxu0 %v910
    %1231 = vmatprep.subr.bf16.mxu0 %v919
    %1232 = vmatpush1.bf16.msra.mxu0 %v918
    %1233 = vmatprep.subr.bf16.mxu0 %v927
    %1234 = vmatpush1.bf16.msra.mxu0 %v926
    %1235 = vmatprep.subr.bf16.mxu0 %v935
    %1236 = vmatpush1.bf16.msra.mxu0 %v934
    %1237 = vmatprep.subr.bf16.mxu0 %v943
    %1238 = vmatpush1.bf16.msra.mxu0 %v942
    %1239 = vmatprep.subr.bf16.mxu0 %v951
    %1240 = vmatpush1.bf16.msra.mxu0 %v950
    %1241 = vmatprep.subr.bf16.mxu0 %v959
    %1242 = vmatpush1.bf16.msra.mxu0 %v958
    %1243 = vmatprep.mubr.bf16.mxu0 %v277
    %1244 = vmatmul.mubr.bf16.gmra.mrb[0].mxu0 %v276
    %v1245 = vpop.f32.mrb[0].mxu0
    %v1246 = vadd.f32 %v435, %v1245
    %v1247 = vpop.f32.mrb[0].mxu0
    %v1248 = vadd.f32 %v439, %v1247
    %v1249 = vpop.f32.mrb[0].mxu0
    %v1250 = vpop.f32.mrb[0].mxu0
    %1251 = vdwg.mxu0
    %v1260 = vcombine.low %v1123, %v1125
    %v1261 = vcombine.low %v1164, %v1166
    %v1263 = vunpack.c.l.s4 1983009808
    %v1264 = vunpack.c.0.s8 %v1263
    %v1265 = vlaneseq
    %v1266 = vshrl.u32 %v1265, 7
    %v1267 = vsub.s32 %v1264, %v1266
    %v1268 = vrot.slane %v1260, %v1267
    %v1270 = vunpack.c.l.s4 1983009808
    %v1271 = vunpack.c.0.s8 %v1270
    %v1272 = vlaneseq
    %v1273 = vshrl.u32 %v1272, 7
    %v1274 = vsub.s32 %v1271, %v1273
    %v1275 = vrot.slane %v1261, %v1274
    %v1276 = vcombine.low %v1268, %v1275
    %v1277 = vcombine.low %v1205, %v1207
    %v1278 = vcombine.low %v1246, %v1248
    %v1280 = vunpack.c.l.s4 1983009808
    %v1281 = vunpack.c.0.s8 %v1280
    %v1282 = vlaneseq
    %v1283 = vshrl.u32 %v1282, 7
    %v1284 = vsub.s32 %v1281, %v1283
    %v1285 = vrot.slane %v1277, %v1284
    %v1287 = vunpack.c.l.s4 1983009808
    %v1288 = vunpack.c.0.s8 %v1287
    %v1289 = vlaneseq
    %v1290 = vshrl.u32 %v1289, 7
    %v1291 = vsub.s32 %v1288, %v1290
    %v1292 = vrot.slane %v1278, %v1291
    %v1293 = vcombine.low %v1285, %v1292
    %1296 = vst [vmem:[#allocation7] sm:$0xff] %v1276
    %1297 = vst [vmem:[#allocation7 + $0x8] sm:$0xff] %v1293
    // Predicated region
    $region34: #{tpu_custom_call.1} parent=1 // pred_check
      _
    $region35: #{tpu_custom_call.1} parent=1 // pred_check_branch
      %1299 = sbr.rel (0) target = $region37
    $region36: #{tpu_custom_call.1} parent=1 // pred_region
      %s1301 = ssub.s32 256, 256
      %1302 = vsyncadd [#allocation4], %s1301
      %s1304 = sshll.u32 [#allocation7], 4
      %s1305 = int_to_ptr.vmem [resolvable:$true] %s1304
      %1307 = dma.vmem_to_hbm [thread:$0]  %s1305, 256, %s6, [#allocation4]
    $region37: #{tpu_custom_call.1} parent=1 // pred_fallthru
      _
    // Predicated region
    $region38: #{tpu_custom_call.1} parent=1 // pred_check
      _
    $region39: #{tpu_custom_call.1} parent=1 // pred_check_branch
      %1309 = sbr.rel (0) target = $region41
    $region40: #{tpu_custom_call.1} parent=1 // pred_region
      %1310 = dma.done [#allocation4], 256
    $region41: #{tpu_custom_call.1} parent=1 // pred_fallthru
      _
    %1311 = vsyncpa [#allocation3], 1
    %1312 = vsyncpa [#allocation6], 1
    %1313 = vsyncpa [#allocation4], 1

</llo_original>
